<compile_context>
chip_gen: v6e
topology: v6e:2x2x1
jax: 0.10.0
libtpu: 0.0.40
codegen_flags: <defaults>
</compile_context>

<pallas_src>
import functools

import jax
import jax.numpy as jnp
from jax.experimental import pallas as pl
from jax.experimental.pallas import tpu as pltpu

_LANE = 128
_TARGET_FOOTPRINT_BYTES = 12 * 1024 * 1024   # ~12 MiB per grid step (pipeline buffers + temps)
_VMEM_LIMIT_BYTES = 32 * 1024 * 1024         # explicit scoped-VMEM ceiling (safe on v5e/v6e/v7x)


def _round_up(a, b):
    return (a + b - 1) // b * b


def _topk_abs_kernel(x_ref, o_ref, *, k, window, packed):
    """Keep the k largest-|x| entries inside each `window`-lane segment, zero the rest."""
    x = x_ref[...]                                            # (T, C)
    shape = x.shape
    ax = len(shape) - 1

    a = jnp.abs(x).astype(jnp.float32)
    bits = pltpu.bitcast(a, jnp.int32)                        # monotone key for |x| >= 0; NaN sorts largest

    lane = jax.lax.broadcasted_iota(jnp.int32, shape, dimension=ax)
    offset = (lane & (window - 1)) if packed else lane        # position inside the logical row

    tie_bits = max(1, (window - 1).bit_length())
    tie_mask = (1 << tie_bits) - 1
    # Fused key: truncated |x| bits in the high part, "lowest index wins" tie-break in the low bits.
    key = (bits & jnp.int32(~tie_mask)) | (jnp.int32(tie_mask) - offset)
    retired = jnp.int32(jnp.iinfo(jnp.int32).min)

    if packed:
        width = shape[ax]
        win_id = lane - offset                                # first lane of each window (unique per window)
        # Per butterfly stride s we roll by s and by width-s; accepting only lanes whose
        # rolled window-id matches the local one keeps the reduce segmented regardless of
        # the rotate direction convention and of wrap-around at the row edges.
        steps = []
        s = 1
        while s < window:
            for sh in (s, width - s):
                same = pltpu.roll(win_id, shift=sh, axis=ax) == win_id
                steps.append((sh, same))
            s *= 2

        def window_max(m):
            for sh, same in steps:
                rolled = pltpu.roll(m, shift=sh, axis=ax)
                m = jnp.maximum(m, jnp.where(same, rolled, retired))
            return m
    else:
        def window_max(m):
            return jnp.max(m, axis=-1, keepdims=True)         # single fused XLU reduce per row

    def select_one(key, keep):
        kmax = window_max(key)                                # window max, broadcast within each window
        win_off = jnp.int32(tie_mask) - (kmax & jnp.int32(tie_mask))
        sel = offset == win_off                               # exactly one lane per window
        return jnp.where(sel, retired, key), keep | sel

    keep = jnp.zeros(shape, dtype=jnp.bool_)
    if k <= 16:                                               # static unroll (LLO scheduling visibility)
        for _ in range(k):
            key, keep = select_one(key, keep)
    else:
        key, keep = jax.lax.fori_loop(
            0, k, lambda _, c: select_one(*c), (key, keep), unroll=4)

    o_ref[...] = jnp.where(keep, x, jnp.zeros_like(x))


def topk_absolutes_1d(x, k):
    """x: (..., L) float array. Keeps the k largest-|x| entries along the last dim, zeros the rest."""
    *lead, L = x.shape
    L = int(L)
    kk = int(min(int(k), L))
    if kk <= 0:
        return jnp.zeros_like(x)
    if kk >= L:
        return x                                              # keeping everything

    R = 1
    for d in lead:
        R *= int(d)
    R = int(R)
    if R == 0:
        return jnp.zeros_like(x)

    itemsize = jnp.dtype(x.dtype).itemsize

    # Lane packing: fold G = 128//L logical rows into one lane-dense physical row
    # (free, contiguous reshape) when L is a power of two below 128.
    packed = (L < _LANE) and ((L & (L - 1)) == 0) and (R % (_LANE // L) == 0)
    if packed:
        rows, cols = R // (_LANE // L), _LANE
    else:
        rows, cols = R, L
    x2 = x.reshape(rows, cols)

    # Block sizing from lane-PADDED bytes: 2x double-buffered in + out at the input dtype,
    # plus ~8 words/element allowance for live 32-bit temporaries (key, keep, iotas, masks).
    padded_cols = _round_up(cols, _LANE)
    sublane = max(8, 32 // max(1, itemsize))
    bytes_per_row = padded_cols * (4 * itemsize + 32)
    rows_target = max(sublane,
                      (_TARGET_FOOTPRINT_BYTES // bytes_per_row) // sublane * sublane)
    tile_rows = rows if rows <= rows_target else rows_target
    grid = (pl.cdiv(rows, tile_rows),)

    kernel = functools.partial(_topk_abs_kernel, k=kk, window=L, packed=packed)
    y2 = pl.pallas_call(
        kernel,
        out_shape=jax.ShapeDtypeStruct((rows, cols), x.dtype),
        grid_spec=pltpu.PrefetchScalarGridSpec(
            num_scalar_prefetch=0,
            grid=grid,
            in_specs=[pl.BlockSpec((tile_rows, cols), lambda i: (i, 0))],
            out_specs=pl.BlockSpec((tile_rows, cols), lambda i: (i, 0)),
        ),
        compiler_params=pltpu.CompilerParams(
            dimension_semantics=("parallel",),
            vmem_limit_bytes=_VMEM_LIMIT_BYTES),
        cost_estimate=pl.CostEstimate(
            flops=8 * kk * int(x.size),
            transcendentals=0,
            bytes_accessed=2 * int(x.size) * itemsize),
    )(x2)
    return y2.reshape(x.shape)


class TopKAbsolutes1D:
    def __init__(self, k):
        self.k = k

    def __call__(self, x):
        return topk_absolutes_1d(x, self.k)


def _check(y, x, k):
    """Tie-robust verification against the exact top-k semantics."""
    assert y.shape == x.shape and y.dtype == x.dtype
    # (1) every surviving entry equals the original value at that position.
    assert bool(jnp.all((y == 0) | (y == x))), "output has values not taken from x"
    # (2) exactly k survivors per row.
    nz = jnp.sum((y != 0).astype(jnp.int32), axis=-1)
    assert bool(jnp.all(nz == k)), "wrong number of kept entries per row"
    # (3) survivors carry the same total magnitude as the true top-k (robust to tie order).
    topk_sum = jnp.sum(jax.lax.top_k(jnp.abs(x), k)[0], axis=-1)
    kept_sum = jnp.sum(jnp.abs(y), axis=-1)
    assert bool(jnp.allclose(kept_sum, topk_sum, rtol=1e-6, atol=1e-6)), "kept set is not the top-k by |x|"


if __name__ == "__main__":
    key = jax.random.PRNGKey(0)
    k1, k2 = jax.random.split(key)

    # Main case: lane-packed path (L = 16 is a power of two < 128).
    x = jax.random.normal(k1, (2, 4, 16, 16), dtype=jnp.float32)
    mod = TopKAbsolutes1D(4)
    y = jax.block_until_ready(mod(x))
    _check(y, x, 4)

    # Fallback case: unpacked path (L = 20 is not a power of two).
    x2 = jax.random.normal(k2, (3, 5, 20), dtype=jnp.float32)
    y2 = jax.block_until_ready(topk_absolutes_1d(x2, 3))
    _check(y2, x2, 3)

    print("KERNEL_OK")
</pallas_src>

<mosaic_0001>
module attributes {stable_mosaic.version = 11 : i64} {
  func.func @_topk_abs_kernel(%arg0: i32, %arg1: memref<16x128xf32, #tpu.memory_space<vmem>>, %arg2: memref<16x128xf32, #tpu.memory_space<vmem>>) attributes {dimension_semantics = [#tpu.dimension_semantics<parallel>], iteration_bounds = array<i64: 1>, scalar_prefetch = 0 : i64, scratch_operands = 0 : i64, tpu.core_type = #tpu.core_type<tc>, window_params = [{transform_indices = @transform_0, window_bounds = array<i64: 16, 128>}, {transform_indices = @transform_1, window_bounds = array<i64: 16, 128>}]} {
    %c0 = arith.constant 0 : index
    %c0_0 = arith.constant 0 : index
    %0 = vector.load %arg1[%c0, %c0_0] : memref<16x128xf32, #tpu.memory_space<vmem>>, vector<16x128xf32>
    %1 = math.absf %0 : vector<16x128xf32>
    %2 = tpu.bitcast %1 : vector<16x128xf32> -> vector<16x128xi32>
    %3 = tpu.iota {dimensions = array<i32: 1>} : vector<16x128xi32>
    %c15_i32 = arith.constant 15 : i32
    %4 = vector.broadcast %c15_i32 : i32 to vector<16x128xi32>
    %5 = arith.andi %3, %4 : vector<16x128xi32>
    %c-16_i32 = arith.constant -16 : i32
    %6 = vector.broadcast %c-16_i32 : i32 to vector<16x128xi32>
    %7 = arith.andi %2, %6 : vector<16x128xi32>
    %c15_i32_1 = arith.constant 15 : i32
    %8 = vector.broadcast %c15_i32_1 : i32 to vector<16x128xi32>
    %9 = arith.subi %8, %5 : vector<16x128xi32>
    %10 = arith.ori %7, %9 : vector<16x128xi32>
    %11 = arith.subi %3, %5 : vector<16x128xi32>
    %c1_i32 = arith.constant 1 : i32
    %12 = tpu.dynamic_rotate %11 by %c1_i32 dim 1 : vector<16x128xi32>, i32 -> vector<16x128xi32>
    %13 = arith.cmpi eq, %12, %11 : vector<16x128xi32>
    %c127_i32 = arith.constant 127 : i32
    %14 = tpu.dynamic_rotate %11 by %c127_i32 dim 1 : vector<16x128xi32>, i32 -> vector<16x128xi32>
    %15 = arith.cmpi eq, %14, %11 : vector<16x128xi32>
    %c2_i32 = arith.constant 2 : i32
    %16 = tpu.dynamic_rotate %11 by %c2_i32 dim 1 : vector<16x128xi32>, i32 -> vector<16x128xi32>
    %17 = arith.cmpi eq, %16, %11 : vector<16x128xi32>
    %c126_i32 = arith.constant 126 : i32
    %18 = tpu.dynamic_rotate %11 by %c126_i32 dim 1 : vector<16x128xi32>, i32 -> vector<16x128xi32>
    %19 = arith.cmpi eq, %18, %11 : vector<16x128xi32>
    %c4_i32 = arith.constant 4 : i32
    %20 = tpu.dynamic_rotate %11 by %c4_i32 dim 1 : vector<16x128xi32>, i32 -> vector<16x128xi32>
    %21 = arith.cmpi eq, %20, %11 : vector<16x128xi32>
    %c124_i32 = arith.constant 124 : i32
    %22 = tpu.dynamic_rotate %11 by %c124_i32 dim 1 : vector<16x128xi32>, i32 -> vector<16x128xi32>
    %23 = arith.cmpi eq, %22, %11 : vector<16x128xi32>
    %c8_i32 = arith.constant 8 : i32
    %24 = tpu.dynamic_rotate %11 by %c8_i32 dim 1 : vector<16x128xi32>, i32 -> vector<16x128xi32>
    %25 = arith.cmpi eq, %24, %11 : vector<16x128xi32>
    %c120_i32 = arith.constant 120 : i32
    %26 = tpu.dynamic_rotate %11 by %c120_i32 dim 1 : vector<16x128xi32>, i32 -> vector<16x128xi32>
    %27 = arith.cmpi eq, %26, %11 : vector<16x128xi32>
    %false = arith.constant false
    %28 = vector.broadcast %false : i1 to vector<16x128xi1>
    %c1_i32_2 = arith.constant 1 : i32
    %29 = tpu.dynamic_rotate %10 by %c1_i32_2 dim 1 : vector<16x128xi32>, i32 -> vector<16x128xi32>
    %c-2147483648_i32 = arith.constant -2147483648 : i32
    %30 = vector.broadcast %c-2147483648_i32 : i32 to vector<16x128xi32>
    %31 = arith.select %13, %29, %30 : vector<16x128xi1>, vector<16x128xi32>
    %32 = arith.maxsi %10, %31 : vector<16x128xi32>
    %c127_i32_3 = arith.constant 127 : i32
    %33 = tpu.dynamic_rotate %32 by %c127_i32_3 dim 1 : vector<16x128xi32>, i32 -> vector<16x128xi32>
    %c-2147483648_i32_4 = arith.constant -2147483648 : i32
    %34 = vector.broadcast %c-2147483648_i32_4 : i32 to vector<16x128xi32>
    %35 = arith.select %15, %33, %34 : vector<16x128xi1>, vector<16x128xi32>
    %36 = arith.maxsi %32, %35 : vector<16x128xi32>
    %c2_i32_5 = arith.constant 2 : i32
    %37 = tpu.dynamic_rotate %36 by %c2_i32_5 dim 1 : vector<16x128xi32>, i32 -> vector<16x128xi32>
    %c-2147483648_i32_6 = arith.constant -2147483648 : i32
    %38 = vector.broadcast %c-2147483648_i32_6 : i32 to vector<16x128xi32>
    %39 = arith.select %17, %37, %38 : vector<16x128xi1>, vector<16x128xi32>
    %40 = arith.maxsi %36, %39 : vector<16x128xi32>
    %c126_i32_7 = arith.constant 126 : i32
    %41 = tpu.dynamic_rotate %40 by %c126_i32_7 dim 1 : vector<16x128xi32>, i32 -> vector<16x128xi32>
    %c-2147483648_i32_8 = arith.constant -2147483648 : i32
    %42 = vector.broadcast %c-2147483648_i32_8 : i32 to vector<16x128xi32>
    %43 = arith.select %19, %41, %42 : vector<16x128xi1>, vector<16x128xi32>
    %44 = arith.maxsi %40, %43 : vector<16x128xi32>
    %c4_i32_9 = arith.constant 4 : i32
    %45 = tpu.dynamic_rotate %44 by %c4_i32_9 dim 1 : vector<16x128xi32>, i32 -> vector<16x128xi32>
    %c-2147483648_i32_10 = arith.constant -2147483648 : i32
    %46 = vector.broadcast %c-2147483648_i32_10 : i32 to vector<16x128xi32>
    %47 = arith.select %21, %45, %46 : vector<16x128xi1>, vector<16x128xi32>
    %48 = arith.maxsi %44, %47 : vector<16x128xi32>
    %c124_i32_11 = arith.constant 124 : i32
    %49 = tpu.dynamic_rotate %48 by %c124_i32_11 dim 1 : vector<16x128xi32>, i32 -> vector<16x128xi32>
    %c-2147483648_i32_12 = arith.constant -2147483648 : i32
    %50 = vector.broadcast %c-2147483648_i32_12 : i32 to vector<16x128xi32>
    %51 = arith.select %23, %49, %50 : vector<16x128xi1>, vector<16x128xi32>
    %52 = arith.maxsi %48, %51 : vector<16x128xi32>
    %c8_i32_13 = arith.constant 8 : i32
    %53 = tpu.dynamic_rotate %52 by %c8_i32_13 dim 1 : vector<16x128xi32>, i32 -> vector<16x128xi32>
    %c-2147483648_i32_14 = arith.constant -2147483648 : i32
    %54 = vector.broadcast %c-2147483648_i32_14 : i32 to vector<16x128xi32>
    %55 = arith.select %25, %53, %54 : vector<16x128xi1>, vector<16x128xi32>
    %56 = arith.maxsi %52, %55 : vector<16x128xi32>
    %c120_i32_15 = arith.constant 120 : i32
    %57 = tpu.dynamic_rotate %56 by %c120_i32_15 dim 1 : vector<16x128xi32>, i32 -> vector<16x128xi32>
    %c-2147483648_i32_16 = arith.constant -2147483648 : i32
    %58 = vector.broadcast %c-2147483648_i32_16 : i32 to vector<16x128xi32>
    %59 = arith.select %27, %57, %58 : vector<16x128xi1>, vector<16x128xi32>
    %60 = arith.maxsi %56, %59 : vector<16x128xi32>
    %c15_i32_17 = arith.constant 15 : i32
    %61 = vector.broadcast %c15_i32_17 : i32 to vector<16x128xi32>
    %62 = arith.andi %60, %61 : vector<16x128xi32>
    %c15_i32_18 = arith.constant 15 : i32
    %63 = vector.broadcast %c15_i32_18 : i32 to vector<16x128xi32>
    %64 = arith.subi %63, %62 : vector<16x128xi32>
    %65 = arith.cmpi eq, %5, %64 : vector<16x128xi32>
    %c-2147483648_i32_19 = arith.constant -2147483648 : i32
    %66 = vector.broadcast %c-2147483648_i32_19 : i32 to vector<16x128xi32>
    %67 = arith.select %65, %66, %10 : vector<16x128xi1>, vector<16x128xi32>
    %68 = arith.ori %28, %65 : vector<16x128xi1>
    %c1_i32_20 = arith.constant 1 : i32
    %69 = tpu.dynamic_rotate %67 by %c1_i32_20 dim 1 : vector<16x128xi32>, i32 -> vector<16x128xi32>
    %c-2147483648_i32_21 = arith.constant -2147483648 : i32
    %70 = vector.broadcast %c-2147483648_i32_21 : i32 to vector<16x128xi32>
    %71 = arith.select %13, %69, %70 : vector<16x128xi1>, vector<16x128xi32>
    %72 = arith.maxsi %67, %71 : vector<16x128xi32>
    %c127_i32_22 = arith.constant 127 : i32
    %73 = tpu.dynamic_rotate %72 by %c127_i32_22 dim 1 : vector<16x128xi32>, i32 -> vector<16x128xi32>
    %c-2147483648_i32_23 = arith.constant -2147483648 : i32
    %74 = vector.broadcast %c-2147483648_i32_23 : i32 to vector<16x128xi32>
    %75 = arith.select %15, %73, %74 : vector<16x128xi1>, vector<16x128xi32>
    %76 = arith.maxsi %72, %75 : vector<16x128xi32>
    %c2_i32_24 = arith.constant 2 : i32
    %77 = tpu.dynamic_rotate %76 by %c2_i32_24 dim 1 : vector<16x128xi32>, i32 -> vector<16x128xi32>
    %c-2147483648_i32_25 = arith.constant -2147483648 : i32
    %78 = vector.broadcast %c-2147483648_i32_25 : i32 to vector<16x128xi32>
    %79 = arith.select %17, %77, %78 : vector<16x128xi1>, vector<16x128xi32>
    %80 = arith.maxsi %76, %79 : vector<16x128xi32>
    %c126_i32_26 = arith.constant 126 : i32
    %81 = tpu.dynamic_rotate %80 by %c126_i32_26 dim 1 : vector<16x128xi32>, i32 -> vector<16x128xi32>
    %c-2147483648_i32_27 = arith.constant -2147483648 : i32
    %82 = vector.broadcast %c-2147483648_i32_27 : i32 to vector<16x128xi32>
    %83 = arith.select %19, %81, %82 : vector<16x128xi1>, vector<16x128xi32>
    %84 = arith.maxsi %80, %83 : vector<16x128xi32>
    %c4_i32_28 = arith.constant 4 : i32
    %85 = tpu.dynamic_rotate %84 by %c4_i32_28 dim 1 : vector<16x128xi32>, i32 -> vector<16x128xi32>
    %c-2147483648_i32_29 = arith.constant -2147483648 : i32
    %86 = vector.broadcast %c-2147483648_i32_29 : i32 to vector<16x128xi32>
    %87 = arith.select %21, %85, %86 : vector<16x128xi1>, vector<16x128xi32>
    %88 = arith.maxsi %84, %87 : vector<16x128xi32>
    %c124_i32_30 = arith.constant 124 : i32
    %89 = tpu.dynamic_rotate %88 by %c124_i32_30 dim 1 : vector<16x128xi32>, i32 -> vector<16x128xi32>
    %c-2147483648_i32_31 = arith.constant -2147483648 : i32
    %90 = vector.broadcast %c-2147483648_i32_31 : i32 to vector<16x128xi32>
    %91 = arith.select %23, %89, %90 : vector<16x128xi1>, vector<16x128xi32>
    %92 = arith.maxsi %88, %91 : vector<16x128xi32>
    %c8_i32_32 = arith.constant 8 : i32
    %93 = tpu.dynamic_rotate %92 by %c8_i32_32 dim 1 : vector<16x128xi32>, i32 -> vector<16x128xi32>
    %c-2147483648_i32_33 = arith.constant -2147483648 : i32
    %94 = vector.broadcast %c-2147483648_i32_33 : i32 to vector<16x128xi32>
    %95 = arith.select %25, %93, %94 : vector<16x128xi1>, vector<16x128xi32>
    %96 = arith.maxsi %92, %95 : vector<16x128xi32>
    %c120_i32_34 = arith.constant 120 : i32
    %97 = tpu.dynamic_rotate %96 by %c120_i32_34 dim 1 : vector<16x128xi32>, i32 -> vector<16x128xi32>
    %c-2147483648_i32_35 = arith.constant -2147483648 : i32
    %98 = vector.broadcast %c-2147483648_i32_35 : i32 to vector<16x128xi32>
    %99 = arith.select %27, %97, %98 : vector<16x128xi1>, vector<16x128xi32>
    %100 = arith.maxsi %96, %99 : vector<16x128xi32>
    %c15_i32_36 = arith.constant 15 : i32
    %101 = vector.broadcast %c15_i32_36 : i32 to vector<16x128xi32>
    %102 = arith.andi %100, %101 : vector<16x128xi32>
    %c15_i32_37 = arith.constant 15 : i32
    %103 = vector.broadcast %c15_i32_37 : i32 to vector<16x128xi32>
    %104 = arith.subi %103, %102 : vector<16x128xi32>
    %105 = arith.cmpi eq, %5, %104 : vector<16x128xi32>
    %c-2147483648_i32_38 = arith.constant -2147483648 : i32
    %106 = vector.broadcast %c-2147483648_i32_38 : i32 to vector<16x128xi32>
    %107 = arith.select %105, %106, %67 : vector<16x128xi1>, vector<16x128xi32>
    %108 = arith.ori %68, %105 : vector<16x128xi1>
    %c1_i32_39 = arith.constant 1 : i32
    %109 = tpu.dynamic_rotate %107 by %c1_i32_39 dim 1 : vector<16x128xi32>, i32 -> vector<16x128xi32>
    %c-2147483648_i32_40 = arith.constant -2147483648 : i32
    %110 = vector.broadcast %c-2147483648_i32_40 : i32 to vector<16x128xi32>
    %111 = arith.select %13, %109, %110 : vector<16x128xi1>, vector<16x128xi32>
    %112 = arith.maxsi %107, %111 : vector<16x128xi32>
    %c127_i32_41 = arith.constant 127 : i32
    %113 = tpu.dynamic_rotate %112 by %c127_i32_41 dim 1 : vector<16x128xi32>, i32 -> vector<16x128xi32>
    %c-2147483648_i32_42 = arith.constant -2147483648 : i32
    %114 = vector.broadcast %c-2147483648_i32_42 : i32 to vector<16x128xi32>
    %115 = arith.select %15, %113, %114 : vector<16x128xi1>, vector<16x128xi32>
    %116 = arith.maxsi %112, %115 : vector<16x128xi32>
    %c2_i32_43 = arith.constant 2 : i32
    %117 = tpu.dynamic_rotate %116 by %c2_i32_43 dim 1 : vector<16x128xi32>, i32 -> vector<16x128xi32>
    %c-2147483648_i32_44 = arith.constant -2147483648 : i32
    %118 = vector.broadcast %c-2147483648_i32_44 : i32 to vector<16x128xi32>
    %119 = arith.select %17, %117, %118 : vector<16x128xi1>, vector<16x128xi32>
    %120 = arith.maxsi %116, %119 : vector<16x128xi32>
    %c126_i32_45 = arith.constant 126 : i32
    %121 = tpu.dynamic_rotate %120 by %c126_i32_45 dim 1 : vector<16x128xi32>, i32 -> vector<16x128xi32>
    %c-2147483648_i32_46 = arith.constant -2147483648 : i32
    %122 = vector.broadcast %c-2147483648_i32_46 : i32 to vector<16x128xi32>
    %123 = arith.select %19, %121, %122 : vector<16x128xi1>, vector<16x128xi32>
    %124 = arith.maxsi %120, %123 : vector<16x128xi32>
    %c4_i32_47 = arith.constant 4 : i32
    %125 = tpu.dynamic_rotate %124 by %c4_i32_47 dim 1 : vector<16x128xi32>, i32 -> vector<16x128xi32>
    %c-2147483648_i32_48 = arith.constant -2147483648 : i32
    %126 = vector.broadcast %c-2147483648_i32_48 : i32 to vector<16x128xi32>
    %127 = arith.select %21, %125, %126 : vector<16x128xi1>, vector<16x128xi32>
    %128 = arith.maxsi %124, %127 : vector<16x128xi32>
    %c124_i32_49 = arith.constant 124 : i32
    %129 = tpu.dynamic_rotate %128 by %c124_i32_49 dim 1 : vector<16x128xi32>, i32 -> vector<16x128xi32>
    %c-2147483648_i32_50 = arith.constant -2147483648 : i32
    %130 = vector.broadcast %c-2147483648_i32_50 : i32 to vector<16x128xi32>
    %131 = arith.select %23, %129, %130 : vector<16x128xi1>, vector<16x128xi32>
    %132 = arith.maxsi %128, %131 : vector<16x128xi32>
    %c8_i32_51 = arith.constant 8 : i32
    %133 = tpu.dynamic_rotate %132 by %c8_i32_51 dim 1 : vector<16x128xi32>, i32 -> vector<16x128xi32>
    %c-2147483648_i32_52 = arith.constant -2147483648 : i32
    %134 = vector.broadcast %c-2147483648_i32_52 : i32 to vector<16x128xi32>
    %135 = arith.select %25, %133, %134 : vector<16x128xi1>, vector<16x128xi32>
    %136 = arith.maxsi %132, %135 : vector<16x128xi32>
    %c120_i32_53 = arith.constant 120 : i32
    %137 = tpu.dynamic_rotate %136 by %c120_i32_53 dim 1 : vector<16x128xi32>, i32 -> vector<16x128xi32>
    %c-2147483648_i32_54 = arith.constant -2147483648 : i32
    %138 = vector.broadcast %c-2147483648_i32_54 : i32 to vector<16x128xi32>
    %139 = arith.select %27, %137, %138 : vector<16x128xi1>, vector<16x128xi32>
    %140 = arith.maxsi %136, %139 : vector<16x128xi32>
    %c15_i32_55 = arith.constant 15 : i32
    %141 = vector.broadcast %c15_i32_55 : i32 to vector<16x128xi32>
    %142 = arith.andi %140, %141 : vector<16x128xi32>
    %c15_i32_56 = arith.constant 15 : i32
    %143 = vector.broadcast %c15_i32_56 : i32 to vector<16x128xi32>
    %144 = arith.subi %143, %142 : vector<16x128xi32>
    %145 = arith.cmpi eq, %5, %144 : vector<16x128xi32>
    %c-2147483648_i32_57 = arith.constant -2147483648 : i32
    %146 = vector.broadcast %c-2147483648_i32_57 : i32 to vector<16x128xi32>
    %147 = arith.select %145, %146, %107 : vector<16x128xi1>, vector<16x128xi32>
    %148 = arith.ori %108, %145 : vector<16x128xi1>
    %c1_i32_58 = arith.constant 1 : i32
    %149 = tpu.dynamic_rotate %147 by %c1_i32_58 dim 1 : vector<16x128xi32>, i32 -> vector<16x128xi32>
    %c-2147483648_i32_59 = arith.constant -2147483648 : i32
    %150 = vector.broadcast %c-2147483648_i32_59 : i32 to vector<16x128xi32>
    %151 = arith.select %13, %149, %150 : vector<16x128xi1>, vector<16x128xi32>
    %152 = arith.maxsi %147, %151 : vector<16x128xi32>
    %c127_i32_60 = arith.constant 127 : i32
    %153 = tpu.dynamic_rotate %152 by %c127_i32_60 dim 1 : vector<16x128xi32>, i32 -> vector<16x128xi32>
    %c-2147483648_i32_61 = arith.constant -2147483648 : i32
    %154 = vector.broadcast %c-2147483648_i32_61 : i32 to vector<16x128xi32>
    %155 = arith.select %15, %153, %154 : vector<16x128xi1>, vector<16x128xi32>
    %156 = arith.maxsi %152, %155 : vector<16x128xi32>
    %c2_i32_62 = arith.constant 2 : i32
    %157 = tpu.dynamic_rotate %156 by %c2_i32_62 dim 1 : vector<16x128xi32>, i32 -> vector<16x128xi32>
    %c-2147483648_i32_63 = arith.constant -2147483648 : i32
    %158 = vector.broadcast %c-2147483648_i32_63 : i32 to vector<16x128xi32>
    %159 = arith.select %17, %157, %158 : vector<16x128xi1>, vector<16x128xi32>
    %160 = arith.maxsi %156, %159 : vector<16x128xi32>
    %c126_i32_64 = arith.constant 126 : i32
    %161 = tpu.dynamic_rotate %160 by %c126_i32_64 dim 1 : vector<16x128xi32>, i32 -> vector<16x128xi32>
    %c-2147483648_i32_65 = arith.constant -2147483648 : i32
    %162 = vector.broadcast %c-2147483648_i32_65 : i32 to vector<16x128xi32>
    %163 = arith.select %19, %161, %162 : vector<16x128xi1>, vector<16x128xi32>
    %164 = arith.maxsi %160, %163 : vector<16x128xi32>
    %c4_i32_66 = arith.constant 4 : i32
    %165 = tpu.dynamic_rotate %164 by %c4_i32_66 dim 1 : vector<16x128xi32>, i32 -> vector<16x128xi32>
    %c-2147483648_i32_67 = arith.constant -2147483648 : i32
    %166 = vector.broadcast %c-2147483648_i32_67 : i32 to vector<16x128xi32>
    %167 = arith.select %21, %165, %166 : vector<16x128xi1>, vector<16x128xi32>
    %168 = arith.maxsi %164, %167 : vector<16x128xi32>
    %c124_i32_68 = arith.constant 124 : i32
    %169 = tpu.dynamic_rotate %168 by %c124_i32_68 dim 1 : vector<16x128xi32>, i32 -> vector<16x128xi32>
    %c-2147483648_i32_69 = arith.constant -2147483648 : i32
    %170 = vector.broadcast %c-2147483648_i32_69 : i32 to vector<16x128xi32>
    %171 = arith.select %23, %169, %170 : vector<16x128xi1>, vector<16x128xi32>
    %172 = arith.maxsi %168, %171 : vector<16x128xi32>
    %c8_i32_70 = arith.constant 8 : i32
    %173 = tpu.dynamic_rotate %172 by %c8_i32_70 dim 1 : vector<16x128xi32>, i32 -> vector<16x128xi32>
    %c-2147483648_i32_71 = arith.constant -2147483648 : i32
    %174 = vector.broadcast %c-2147483648_i32_71 : i32 to vector<16x128xi32>
    %175 = arith.select %25, %173, %174 : vector<16x128xi1>, vector<16x128xi32>
    %176 = arith.maxsi %172, %175 : vector<16x128xi32>
    %c120_i32_72 = arith.constant 120 : i32
    %177 = tpu.dynamic_rotate %176 by %c120_i32_72 dim 1 : vector<16x128xi32>, i32 -> vector<16x128xi32>
    %c-2147483648_i32_73 = arith.constant -2147483648 : i32
    %178 = vector.broadcast %c-2147483648_i32_73 : i32 to vector<16x128xi32>
    %179 = arith.select %27, %177, %178 : vector<16x128xi1>, vector<16x128xi32>
    %180 = arith.maxsi %176, %179 : vector<16x128xi32>
    %c15_i32_74 = arith.constant 15 : i32
    %181 = vector.broadcast %c15_i32_74 : i32 to vector<16x128xi32>
    %182 = arith.andi %180, %181 : vector<16x128xi32>
    %c15_i32_75 = arith.constant 15 : i32
    %183 = vector.broadcast %c15_i32_75 : i32 to vector<16x128xi32>
    %184 = arith.subi %183, %182 : vector<16x128xi32>
    %185 = arith.cmpi eq, %5, %184 : vector<16x128xi32>
    %186 = arith.ori %148, %185 : vector<16x128xi1>
    %cst = arith.constant 0.000000e+00 : f32
    %187 = vector.broadcast %cst : f32 to vector<16x128xf32>
    %188 = arith.select %186, %0, %187 : vector<16x128xi1>, vector<16x128xf32>
    %c0_76 = arith.constant 0 : index
    %c0_77 = arith.constant 0 : index
    %189 = vector.load %arg2[%c0_76, %c0_77] : memref<16x128xf32, #tpu.memory_space<vmem>>, vector<16x128xf32>
    tpu.vector_store %arg2[%c0_76, %c0_77], %188 {strides = array<i32>} : memref<16x128xf32, #tpu.memory_space<vmem>>, vector<16x128xf32>,
    return
  }
  func.func @transform_0(%arg0: i32) -> (i32, i32) {
    %c0_i32 = arith.constant 0 : i32
    %c0_i32_0 = arith.constant 0 : i32
    return %arg0, %c0_i32 : i32, i32
  }
  func.func @transform_1(%arg0: i32) -> (i32, i32) {
    %c0_i32 = arith.constant 0 : i32
    %c0_i32_0 = arith.constant 0 : i32
    return %arg0, %c0_i32 : i32, i32
  }
}

</mosaic_0001>

<llo_original>
// kernel: tpu_custom_call.1
$region0: #{tpu_custom_call.1}
  #allocation0 [shape = 'u32[]', space=smem, size = 0x4, offset = 0x4, fixed_abs, tag = 'smem constant byte address 0x4 - core index']
  #allocation1 [shape = 'u32[144,128]{1,0:T(1,128)}', space=vmem, size = 0x12000, scoped, tag = 'internal scratch']
  %s0 = inlined_call_operand.hbm [shape: f32[16,128], index: 0, kind: input, shape index: {}]
  %s1 = inlined_call_operand.hbm [shape: f32[16,128], index: 1, kind: output, shape index: {}]
  %s2 = sld [smem:[#allocation0]]
  $region18: #{tpu_custom_call.1} parent=0
    _
  %s4 = ssub.s32 1, %s2
  %s5 = scalar_select 0, %s4, %s2
  $region1: #{tpu_custom_call.1} parent=0
    #allocation2 [shape = 'u8[8192]{0}', space=vmem, size = 0x2000, scoped, tag = 'input window, operand 0, single buffered']
    #allocation3 [shape = 's32[1]{0}', space=sflag, size = 0x4, scoped, tag = 'scoped memory for tpu_custom_call.1']
    #allocation4 [shape = 's32[1]{0}', space=sflag, size = 0x4, scoped, tag = 'scoped memory for tpu_custom_call.1']
    #allocation5 [shape = 'u8[8192]{0}', space=vmem, size = 0x2000, scoped, tag = 'output window, operand 0, single buffered']
    %6 = vsyncpa [#allocation3], 0
    %7 = vsyncpa [#allocation4], 0
    // Predicated region
    $region2: #{tpu_custom_call.1} parent=1 // pred_check
      _
    $region3: #{tpu_custom_call.1} parent=1 // pred_check_branch
      %9 = sbr.rel (0) target = $region5
    $region4: #{tpu_custom_call.1} parent=1 // pred_region
      %s11 = ssub.s32 256, 256
      %12 = vsyncadd [#allocation3], %s11
      %s13 = sshll.u32 [#allocation2], 4
      %s14 = int_to_ptr.vmem [resolvable:$true] %s13
      %19 = dma.hbm_to_vmem [thread:$0]  %s0, 256, %s14, [#allocation3], 128, 128, 8
    $region5: #{tpu_custom_call.1} parent=1 // pred_fallthru
      _
    // Predicated region
    $region6: #{tpu_custom_call.1} parent=1 // pred_check
      _
    $region7: #{tpu_custom_call.1} parent=1 // pred_check_branch
      %21 = sbr.rel (0) target = $region9
    $region8: #{tpu_custom_call.1} parent=1 // pred_region
      %22 = dma.done [#allocation3], 256
    $region9: #{tpu_custom_call.1} parent=1 // pred_fallthru
      _
    %v23 = vld [vmem:[#allocation2] sm:$0xff]
    %v24 = vld [vmem:[#allocation2 + $0x8] sm:$0xff]
    %v25 = vand.u32 2147483647, %v23
    %v26 = vand.u32 2147483647, %v24
    %v29 = vlaneseq
    %v30 = vand.u32 %v29, 127
    %v31 = vand.u32 %v30, 15
    %v32 = vand.u32 %v25, 4294967280
    %v33 = vand.u32 %v26, 4294967280
    %v34 = vsub.s32 15, %v31
    %v35 = vor.u32 %v32, %v34
    %v36 = vor.u32 %v33, %v34
    %v37 = vsub.s32 %v30, %v31
    %38 = vrot.lane.b32.xlu0 %v37, 1
    %v39 = vpop.permute.xlu0 %38
    %vm40 = vcmp.eq.s32.totalorder %v39, %v37
    %41 = vrot.lane.b32.xlu0 %v37, 127
    %v42 = vpop.permute.xlu0 %41
    %vm43 = vcmp.eq.s32.totalorder %v42, %v37
    %44 = vrot.lane.b32.xlu0 %v37, 2
    %v45 = vpop.permute.xlu0 %44
    %vm46 = vcmp.eq.s32.totalorder %v45, %v37
    %47 = vrot.lane.b32.xlu0 %v37, 126
    %v48 = vpop.permute.xlu0 %47
    %vm49 = vcmp.eq.s32.totalorder %v48, %v37
    %50 = vrot.lane.b32.xlu0 %v37, 4
    %v51 = vpop.permute.xlu0 %50
    %vm52 = vcmp.eq.s32.totalorder %v51, %v37
    %53 = vrot.lane.b32.xlu0 %v37, 124
    %v54 = vpop.permute.xlu0 %53
    %vm55 = vcmp.eq.s32.totalorder %v54, %v37
    %56 = vrot.lane.b32.xlu0 %v37, 8
    %v57 = vpop.permute.xlu0 %56
    %vm58 = vcmp.eq.s32.totalorder %v57, %v37
    %59 = vrot.lane.b32.xlu0 %v37, 120
    %v60 = vpop.permute.xlu0 %59
    %vm61 = vcmp.eq.s32.totalorder %v60, %v37
    %62 = vrot.lane.b32.xlu0 %v35, 1
    %v63 = vpop.permute.xlu0 %62
    %64 = vrot.lane.b32.xlu0 %v36, 1
    %v65 = vpop.permute.xlu0 %64
    %v66 = vsel %vm40, %v63, 2147483648
    %v67 = vsel %vm40, %v65, 2147483648
    %vm68 = vcmp.gt.s32.totalorder %v35, %v66
    %v69 = vsel %vm68, %v35, %v66
    %vm70 = vcmp.gt.s32.totalorder %v36, %v67
    %v71 = vsel %vm70, %v36, %v67
    %72 = vrot.lane.b32.xlu0 %v69, 127
    %v73 = vpop.permute.xlu0 %72
    %74 = vrot.lane.b32.xlu0 %v71, 127
    %v75 = vpop.permute.xlu0 %74
    %v76 = vsel %vm43, %v73, 2147483648
    %v77 = vsel %vm43, %v75, 2147483648
    %vm78 = vcmp.gt.s32.totalorder %v69, %v76
    %v79 = vsel %vm78, %v69, %v76
    %vm80 = vcmp.gt.s32.totalorder %v71, %v77
    %v81 = vsel %vm80, %v71, %v77
    %82 = vrot.lane.b32.xlu0 %v79, 2
    %v83 = vpop.permute.xlu0 %82
    %84 = vrot.lane.b32.xlu0 %v81, 2
    %v85 = vpop.permute.xlu0 %84
    %v86 = vsel %vm46, %v83, 2147483648
    %v87 = vsel %vm46, %v85, 2147483648
    %vm88 = vcmp.gt.s32.totalorder %v79, %v86
    %v89 = vsel %vm88, %v79, %v86
    %vm90 = vcmp.gt.s32.totalorder %v81, %v87
    %v91 = vsel %vm90, %v81, %v87
    %92 = vrot.lane.b32.xlu0 %v89, 126
    %v93 = vpop.permute.xlu0 %92
    %94 = vrot.lane.b32.xlu0 %v91, 126
    %v95 = vpop.permute.xlu0 %94
    %v96 = vsel %vm49, %v93, 2147483648
    %v97 = vsel %vm49, %v95, 2147483648
    %vm98 = vcmp.gt.s32.totalorder %v89, %v96
    %v99 = vsel %vm98, %v89, %v96
    %vm100 = vcmp.gt.s32.totalorder %v91, %v97
    %v101 = vsel %vm100, %v91, %v97
    %102 = vrot.lane.b32.xlu0 %v99, 4
    %v103 = vpop.permute.xlu0 %102
    %104 = vrot.lane.b32.xlu0 %v101, 4
    %v105 = vpop.permute.xlu0 %104
    %v106 = vsel %vm52, %v103, 2147483648
    %v107 = vsel %vm52, %v105, 2147483648
    %vm108 = vcmp.gt.s32.totalorder %v99, %v106
    %v109 = vsel %vm108, %v99, %v106
    %vm110 = vcmp.gt.s32.totalorder %v101, %v107
    %v111 = vsel %vm110, %v101, %v107
    %112 = vrot.lane.b32.xlu0 %v109, 124
    %v113 = vpop.permute.xlu0 %112
    %114 = vrot.lane.b32.xlu0 %v111, 124
    %v115 = vpop.permute.xlu0 %114
    %v116 = vsel %vm55, %v113, 2147483648
    %v117 = vsel %vm55, %v115, 2147483648
    %vm118 = vcmp.gt.s32.totalorder %v109, %v116
    %v119 = vsel %vm118, %v109, %v116
    %vm120 = vcmp.gt.s32.totalorder %v111, %v117
    %v121 = vsel %vm120, %v111, %v117
    %122 = vrot.lane.b32.xlu0 %v119, 8
    %v123 = vpop.permute.xlu0 %122
    %124 = vrot.lane.b32.xlu0 %v121, 8
    %v125 = vpop.permute.xlu0 %124
    %v126 = vsel %vm58, %v123, 2147483648
    %v127 = vsel %vm58, %v125, 2147483648
    %vm128 = vcmp.gt.s32.totalorder %v119, %v126
    %v129 = vsel %vm128, %v119, %v126
    %vm130 = vcmp.gt.s32.totalorder %v121, %v127
    %v131 = vsel %vm130, %v121, %v127
    %132 = vrot.lane.b32.xlu0 %v129, 120
    %v133 = vpop.permute.xlu0 %132
    %134 = vrot.lane.b32.xlu0 %v131, 120
    %v135 = vpop.permute.xlu0 %134
    %v136 = vsel %vm61, %v133, 2147483648
    %v137 = vsel %vm61, %v135, 2147483648
    %vm138 = vcmp.gt.s32.totalorder %v129, %v136
    %v139 = vsel %vm138, %v129, %v136
    %vm140 = vcmp.gt.s32.totalorder %v131, %v137
    %v141 = vsel %vm140, %v131, %v137
    %v142 = vand.u32 %v139, 15
    %v143 = vand.u32 %v141, 15
    %v144 = vsub.s32 15, %v142
    %v145 = vsub.s32 15, %v143
    %vm146 = vcmp.eq.s32.totalorder %v31, %v144
    %vm147 = vcmp.eq.s32.totalorder %v31, %v145
    %v148 = vsel %vm146, 2147483648, %v35
    %v149 = vsel %vm147, 2147483648, %v36
    %150 = vrot.lane.b32.xlu0 %v148, 1
    %v151 = vpop.permute.xlu0 %150
    %152 = vrot.lane.b32.xlu0 %v149, 1
    %v153 = vpop.permute.xlu0 %152
    %v154 = vsel %vm40, %v151, 2147483648
    %v155 = vsel %vm40, %v153, 2147483648
    %vm156 = vcmp.gt.s32.totalorder %v148, %v154
    %v157 = vsel %vm156, %v148, %v154
    %vm158 = vcmp.gt.s32.totalorder %v149, %v155
    %v159 = vsel %vm158, %v149, %v155
    %160 = vrot.lane.b32.xlu0 %v157, 127
    %v161 = vpop.permute.xlu0 %160
    %162 = vrot.lane.b32.xlu0 %v159, 127
    %v163 = vpop.permute.xlu0 %162
    %v164 = vsel %vm43, %v161, 2147483648
    %v165 = vsel %vm43, %v163, 2147483648
    %vm166 = vcmp.gt.s32.totalorder %v157, %v164
    %v167 = vsel %vm166, %v157, %v164
    %vm168 = vcmp.gt.s32.totalorder %v159, %v165
    %v169 = vsel %vm168, %v159, %v165
    %170 = vrot.lane.b32.xlu0 %v167, 2
    %v171 = vpop.permute.xlu0 %170
    %172 = vrot.lane.b32.xlu0 %v169, 2
    %v173 = vpop.permute.xlu0 %172
    %v174 = vsel %vm46, %v171, 2147483648
    %v175 = vsel %vm46, %v173, 2147483648
    %vm176 = vcmp.gt.s32.totalorder %v167, %v174
    %v177 = vsel %vm176, %v167, %v174
    %vm178 = vcmp.gt.s32.totalorder %v169, %v175
    %v179 = vsel %vm178, %v169, %v175
    %180 = vrot.lane.b32.xlu0 %v177, 126
    %v181 = vpop.permute.xlu0 %180
    %182 = vrot.lane.b32.xlu0 %v179, 126
    %v183 = vpop.permute.xlu0 %182
    %v184 = vsel %vm49, %v181, 2147483648
    %v185 = vsel %vm49, %v183, 2147483648
    %vm186 = vcmp.gt.s32.totalorder %v177, %v184
    %v187 = vsel %vm186, %v177, %v184
    %vm188 = vcmp.gt.s32.totalorder %v179, %v185
    %v189 = vsel %vm188, %v179, %v185
    %190 = vrot.lane.b32.xlu0 %v187, 4
    %v191 = vpop.permute.xlu0 %190
    %192 = vrot.lane.b32.xlu0 %v189, 4
    %v193 = vpop.permute.xlu0 %192
    %v194 = vsel %vm52, %v191, 2147483648
    %v195 = vsel %vm52, %v193, 2147483648
    %vm196 = vcmp.gt.s32.totalorder %v187, %v194
    %v197 = vsel %vm196, %v187, %v194
    %vm198 = vcmp.gt.s32.totalorder %v189, %v195
    %v199 = vsel %vm198, %v189, %v195
    %200 = vrot.lane.b32.xlu0 %v197, 124
    %v201 = vpop.permute.xlu0 %200
    %202 = vrot.lane.b32.xlu0 %v199, 124
    %v203 = vpop.permute.xlu0 %202
    %v204 = vsel %vm55, %v201, 2147483648
    %v205 = vsel %vm55, %v203, 2147483648
    %vm206 = vcmp.gt.s32.totalorder %v197, %v204
    %v207 = vsel %vm206, %v197, %v204
    %vm208 = vcmp.gt.s32.totalorder %v199, %v205
    %v209 = vsel %vm208, %v199, %v205
    %210 = vrot.lane.b32.xlu0 %v207, 8
    %v211 = vpop.permute.xlu0 %210
    %212 = vrot.lane.b32.xlu0 %v209, 8
    %v213 = vpop.permute.xlu0 %212
    %v214 = vsel %vm58, %v211, 2147483648
    %v215 = vsel %vm58, %v213, 2147483648
    %vm216 = vcmp.gt.s32.totalorder %v207, %v214
    %v217 = vsel %vm216, %v207, %v214
    %vm218 = vcmp.gt.s32.totalorder %v209, %v215
    %v219 = vsel %vm218, %v209, %v215
    %220 = vrot.lane.b32.xlu0 %v217, 120
    %v221 = vpop.permute.xlu0 %220
    %222 = vrot.lane.b32.xlu0 %v219, 120
    %v223 = vpop.permute.xlu0 %222
    %v224 = vsel %vm61, %v221, 2147483648
    %v225 = vsel %vm61, %v223, 2147483648
    %vm226 = vcmp.gt.s32.totalorder %v217, %v224
    %v227 = vsel %vm226, %v217, %v224
    %vm228 = vcmp.gt.s32.totalorder %v219, %v225
    %v229 = vsel %vm228, %v219, %v225
    %v230 = vand.u32 %v227, 15
    %v231 = vand.u32 %v229, 15
    %v232 = vsub.s32 15, %v230
    %v233 = vsub.s32 15, %v231
    %vm234 = vcmp.eq.s32.totalorder %v31, %v232
    %vm235 = vcmp.eq.s32.totalorder %v31, %v233
    %v236 = vsel %vm234, 2147483648, %v148
    %v237 = vsel %vm235, 2147483648, %v149
    %vm238 = vmor %vm146, %vm234
    %vm239 = vmor %vm147, %vm235
    %240 = vrot.lane.b32.xlu0 %v236, 1
    %v241 = vpop.permute.xlu0 %240
    %242 = vrot.lane.b32.xlu0 %v237, 1
    %v243 = vpop.permute.xlu0 %242
    %v244 = vsel %vm40, %v241, 2147483648
    %v245 = vsel %vm40, %v243, 2147483648
    %vm246 = vcmp.gt.s32.totalorder %v236, %v244
    %v247 = vsel %vm246, %v236, %v244
    %vm248 = vcmp.gt.s32.totalorder %v237, %v245
    %v249 = vsel %vm248, %v237, %v245
    %250 = vrot.lane.b32.xlu0 %v247, 127
    %v251 = vpop.permute.xlu0 %250
    %252 = vrot.lane.b32.xlu0 %v249, 127
    %v253 = vpop.permute.xlu0 %252
    %v254 = vsel %vm43, %v251, 2147483648
    %v255 = vsel %vm43, %v253, 2147483648
    %vm256 = vcmp.gt.s32.totalorder %v247, %v254
    %v257 = vsel %vm256, %v247, %v254
    %vm258 = vcmp.gt.s32.totalorder %v249, %v255
    %v259 = vsel %vm258, %v249, %v255
    %260 = vrot.lane.b32.xlu0 %v257, 2
    %v261 = vpop.permute.xlu0 %260
    %262 = vrot.lane.b32.xlu0 %v259, 2
    %v263 = vpop.permute.xlu0 %262
    %v264 = vsel %vm46, %v261, 2147483648
    %v265 = vsel %vm46, %v263, 2147483648
    %vm266 = vcmp.gt.s32.totalorder %v257, %v264
    %v267 = vsel %vm266, %v257, %v264
    %vm268 = vcmp.gt.s32.totalorder %v259, %v265
    %v269 = vsel %vm268, %v259, %v265
    %270 = vrot.lane.b32.xlu0 %v267, 126
    %v271 = vpop.permute.xlu0 %270
    %272 = vrot.lane.b32.xlu0 %v269, 126
    %v273 = vpop.permute.xlu0 %272
    %v274 = vsel %vm49, %v271, 2147483648
    %v275 = vsel %vm49, %v273, 2147483648
    %vm276 = vcmp.gt.s32.totalorder %v267, %v274
    %v277 = vsel %vm276, %v267, %v274
    %vm278 = vcmp.gt.s32.totalorder %v269, %v275
    %v279 = vsel %vm278, %v269, %v275
    %280 = vrot.lane.b32.xlu0 %v277, 4
    %v281 = vpop.permute.xlu0 %280
    %282 = vrot.lane.b32.xlu0 %v279, 4
    %v283 = vpop.permute.xlu0 %282
    %v284 = vsel %vm52, %v281, 2147483648
    %v285 = vsel %vm52, %v283, 2147483648
    %vm286 = vcmp.gt.s32.totalorder %v277, %v284
    %v287 = vsel %vm286, %v277, %v284
    %vm288 = vcmp.gt.s32.totalorder %v279, %v285
    %v289 = vsel %vm288, %v279, %v285
    %290 = vrot.lane.b32.xlu0 %v287, 124
    %v291 = vpop.permute.xlu0 %290
    %292 = vrot.lane.b32.xlu0 %v289, 124
    %v293 = vpop.permute.xlu0 %292
    %v294 = vsel %vm55, %v291, 2147483648
    %v295 = vsel %vm55, %v293, 2147483648
    %vm296 = vcmp.gt.s32.totalorder %v287, %v294
    %v297 = vsel %vm296, %v287, %v294
    %vm298 = vcmp.gt.s32.totalorder %v289, %v295
    %v299 = vsel %vm298, %v289, %v295
    %300 = vrot.lane.b32.xlu0 %v297, 8
    %v301 = vpop.permute.xlu0 %300
    %302 = vrot.lane.b32.xlu0 %v299, 8
    %v303 = vpop.permute.xlu0 %302
    %v304 = vsel %vm58, %v301, 2147483648
    %v305 = vsel %vm58, %v303, 2147483648
    %vm306 = vcmp.gt.s32.totalorder %v297, %v304
    %v307 = vsel %vm306, %v297, %v304
    %vm308 = vcmp.gt.s32.totalorder %v299, %v305
    %v309 = vsel %vm308, %v299, %v305
    %310 = vrot.lane.b32.xlu0 %v307, 120
    %v311 = vpop.permute.xlu0 %310
    %312 = vrot.lane.b32.xlu0 %v309, 120
    %v313 = vpop.permute.xlu0 %312
    %v314 = vsel %vm61, %v311, 2147483648
    %v315 = vsel %vm61, %v313, 2147483648
    %vm316 = vcmp.gt.s32.totalorder %v307, %v314
    %v317 = vsel %vm316, %v307, %v314
    %vm318 = vcmp.gt.s32.totalorder %v309, %v315
    %v319 = vsel %vm318, %v309, %v315
    %v320 = vand.u32 %v317, 15
    %v321 = vand.u32 %v319, 15
    %v322 = vsub.s32 15, %v320
    %v323 = vsub.s32 15, %v321
    %vm324 = vcmp.eq.s32.totalorder %v31, %v322
    %vm325 = vcmp.eq.s32.totalorder %v31, %v323
    %v326 = vsel %vm324, 2147483648, %v236
    %v327 = vsel %vm325, 2147483648, %v237
    %vm328 = vmor %vm238, %vm324
    %vm329 = vmor %vm239, %vm325
    %330 = vrot.lane.b32.xlu0 %v326, 1
    %v331 = vpop.permute.xlu0 %330
    %332 = vrot.lane.b32.xlu0 %v327, 1
    %v333 = vpop.permute.xlu0 %332
    %v334 = vsel %vm40, %v331, 2147483648
    %v335 = vsel %vm40, %v333, 2147483648
    %vm336 = vcmp.gt.s32.totalorder %v326, %v334
    %v337 = vsel %vm336, %v326, %v334
    %vm338 = vcmp.gt.s32.totalorder %v327, %v335
    %v339 = vsel %vm338, %v327, %v335
    %340 = vrot.lane.b32.xlu0 %v337, 127
    %v341 = vpop.permute.xlu0 %340
    %342 = vrot.lane.b32.xlu0 %v339, 127
    %v343 = vpop.permute.xlu0 %342
    %v344 = vsel %vm43, %v341, 2147483648
    %v345 = vsel %vm43, %v343, 2147483648
    %vm346 = vcmp.gt.s32.totalorder %v337, %v344
    %v347 = vsel %vm346, %v337, %v344
    %vm348 = vcmp.gt.s32.totalorder %v339, %v345
    %v349 = vsel %vm348, %v339, %v345
    %350 = vrot.lane.b32.xlu0 %v347, 2
    %v351 = vpop.permute.xlu0 %350
    %352 = vrot.lane.b32.xlu0 %v349, 2
    %v353 = vpop.permute.xlu0 %352
    %v354 = vsel %vm46, %v351, 2147483648
    %v355 = vsel %vm46, %v353, 2147483648
    %vm356 = vcmp.gt.s32.totalorder %v347, %v354
    %v357 = vsel %vm356, %v347, %v354
    %vm358 = vcmp.gt.s32.totalorder %v349, %v355
    %v359 = vsel %vm358, %v349, %v355
    %360 = vrot.lane.b32.xlu0 %v357, 126
    %v361 = vpop.permute.xlu0 %360
    %362 = vrot.lane.b32.xlu0 %v359, 126
    %v363 = vpop.permute.xlu0 %362
    %v364 = vsel %vm49, %v361, 2147483648
    %v365 = vsel %vm49, %v363, 2147483648
    %vm366 = vcmp.gt.s32.totalorder %v357, %v364
    %v367 = vsel %vm366, %v357, %v364
    %vm368 = vcmp.gt.s32.totalorder %v359, %v365
    %v369 = vsel %vm368, %v359, %v365
    %370 = vrot.lane.b32.xlu0 %v367, 4
    %v371 = vpop.permute.xlu0 %370
    %372 = vrot.lane.b32.xlu0 %v369, 4
    %v373 = vpop.permute.xlu0 %372
    %v374 = vsel %vm52, %v371, 2147483648
    %v375 = vsel %vm52, %v373, 2147483648
    %vm376 = vcmp.gt.s32.totalorder %v367, %v374
    %v377 = vsel %vm376, %v367, %v374
    %vm378 = vcmp.gt.s32.totalorder %v369, %v375
    %v379 = vsel %vm378, %v369, %v375
    %380 = vrot.lane.b32.xlu0 %v377, 124
    %v381 = vpop.permute.xlu0 %380
    %382 = vrot.lane.b32.xlu0 %v379, 124
    %v383 = vpop.permute.xlu0 %382
    %v384 = vsel %vm55, %v381, 2147483648
    %v385 = vsel %vm55, %v383, 2147483648
    %vm386 = vcmp.gt.s32.totalorder %v377, %v384
    %v387 = vsel %vm386, %v377, %v384
    %vm388 = vcmp.gt.s32.totalorder %v379, %v385
    %v389 = vsel %vm388, %v379, %v385
    %390 = vrot.lane.b32.xlu0 %v387, 8
    %v391 = vpop.permute.xlu0 %390
    %392 = vrot.lane.b32.xlu0 %v389, 8
    %v393 = vpop.permute.xlu0 %392
    %v394 = vsel %vm58, %v391, 2147483648
    %v395 = vsel %vm58, %v393, 2147483648
    %vm396 = vcmp.gt.s32.totalorder %v387, %v394
    %v397 = vsel %vm396, %v387, %v394
    %vm398 = vcmp.gt.s32.totalorder %v389, %v395
    %v399 = vsel %vm398, %v389, %v395
    %400 = vrot.lane.b32.xlu0 %v397, 120
    %v401 = vpop.permute.xlu0 %400
    %402 = vrot.lane.b32.xlu0 %v399, 120
    %v403 = vpop.permute.xlu0 %402
    %v404 = vsel %vm61, %v401, 2147483648
    %v405 = vsel %vm61, %v403, 2147483648
    %vm406 = vcmp.gt.s32.totalorder %v397, %v404
    %v407 = vsel %vm406, %v397, %v404
    %vm408 = vcmp.gt.s32.totalorder %v399, %v405
    %v409 = vsel %vm408, %v399, %v405
    %v410 = vand.u32 %v407, 15
    %v411 = vand.u32 %v409, 15
    %v412 = vsub.s32 15, %v410
    %v413 = vsub.s32 15, %v411
    %vm414 = vcmp.eq.s32.totalorder %v31, %v412
    %vm415 = vcmp.eq.s32.totalorder %v31, %v413
    %vm416 = vmor %vm328, %vm414
    %vm417 = vmor %vm329, %vm415
    %v418 = vsel %vm416, %v23, 0.0
    %v419 = vsel %vm417, %v24, 0.0
    %420 = vst [vmem:[#allocation5] sm:$0xff] %v418
    %421 = vst [vmem:[#allocation5 + $0x8] sm:$0xff] %v419
    // Predicated region
    $region10: #{tpu_custom_call.1} parent=1 // pred_check
      _
    $region11: #{tpu_custom_call.1} parent=1 // pred_check_branch
      %423 = sbr.rel (0) target = $region13
    $region12: #{tpu_custom_call.1} parent=1 // pred_region
      %s425 = ssub.s32 256, 256
      %426 = vsyncadd [#allocation4], %s425
      %s427 = sshll.u32 [#allocation5], 4
      %s428 = int_to_ptr.vmem [resolvable:$true] %s427
      %433 = dma.vmem_to_hbm [thread:$0]  %s428, 256, %s1, [#allocation4], 128, 128, 8
    $region13: #{tpu_custom_call.1} parent=1 // pred_fallthru
      _
    // Predicated region
    $region14: #{tpu_custom_call.1} parent=1 // pred_check
      _
    $region15: #{tpu_custom_call.1} parent=1 // pred_check_branch
      %435 = sbr.rel (0) target = $region17
    $region16: #{tpu_custom_call.1} parent=1 // pred_region
      %436 = dma.done [#allocation4], 256
    $region17: #{tpu_custom_call.1} parent=1 // pred_fallthru
      _
    %437 = vsyncpa [#allocation3], 1
    %438 = vsyncpa [#allocation4], 1

</llo_original>
